<compile_context>
chip_gen: v7x
topology: tpu7x:2x2x1
jax: 0.10.0
libtpu: 0.0.40
codegen_flags: <defaults>
</compile_context>

<pallas_src>
import jax
import jax.numpy as jnp
from jax.experimental import pallas as pl
from jax.experimental.pallas import tpu as pltpu

LN_EPS = 1e-5                       # torch.nn.LayerNorm default eps
_NT = (((1,), (1,)), ((), ()))      # contract both operands' minor dims (A @ B.T)


def _round_up(x, m):
    return ((x + m - 1) // m) * m


def _cdiv(a, b):
    return -(-a // b)


def _choose_tile_rows(num_rows, t, h, budget_bytes=20 * 1024 * 1024):
    """Rows per grid step: lane-dense multiple of 128, sized from a VMEM budget."""
    lane_t = _round_up(max(t, 1), 128)          # input tiles are lane-padded in VMEM
    per_row = 4 * (4 * lane_t + 8 * h + 64)     # 2 inputs x 2 bufs + (H,TR) temps + slack
    tr = (budget_bytes // per_row) // 128 * 128
    tr = int(max(128, min(tr, 8192)))
    if num_rows > 4 * 1024:
        # Keep >= ~4 grid steps so v7x's two TensorCores each still pipeline.
        tr = min(tr, max(1024, _round_up(_cdiv(num_rows, 4), 128)))
    return min(tr, _round_up(num_rows, 128))


def velocity_nam_kernel(up_ref, dn_ref, w1_ref, lnp_ref, w2_ref, scal_ref, out_ref):
    """One row tile of the forward pass.

    up_ref, dn_ref : (TR, T) VMEM  -- streamed input rows (natural layout)
    w1_ref         : (2H, T) VMEM  -- [W11 ; W21] in torch (out, in) layout (resident)
    lnp_ref        : (2H, 3) VMEM  -- columns [bias1 | gamma | beta], branches stacked
    w2_ref         : (16, H) VMEM  -- rows 0 / 8 hold w12 / w22, rest zero (MXU padding)
    scal_ref       : (5,)    SMEM  -- [b12, b22, w3_up, w3_down, b3]
    out_ref        : (1, TR) VMEM  -- lane-dense output row
    """
    # TODO(synk): nn.Dropout(0.5) is identity here (inference / eval mode only).
    H = w2_ref.shape[1]

    def branch(x, w1, b1, gamma, beta, w2p, b2):
        # (H, T) x (TR, T) -> (H, TR): rows land on lanes, hidden on sublanes.
        h = jax.lax.dot_general(w1, x, _NT, preferred_element_type=jnp.float32) + b1
        # LayerNorm over the hidden (sublane) axis; one pass for mean / mean-of-sq.
        mu = jnp.mean(h, axis=0, keepdims=True)                        # (1, TR)
        ms = jnp.mean(h * h, axis=0, keepdims=True)
        var = jnp.maximum(ms - mu * mu, 0.0)
        hn = (h - mu) * jax.lax.rsqrt(var + LN_EPS) * gamma + beta
        hn = jnp.maximum(hn, 0.0)                                      # ReLU
        # Linear(H -> 1) on the (otherwise idle) MXU; only row 0 is non-zero.
        z = jnp.dot(w2p, hn, preferred_element_type=jnp.float32)       # (8, TR)
        return jax.nn.sigmoid(z[0:1, :] + b2)                          # (1, TR)

    s_up = branch(up_ref[...], w1_ref[:H, :], lnp_ref[:H, 0:1], lnp_ref[:H, 1:2],
                  lnp_ref[:H, 2:3], w2_ref[0:8, :], scal_ref[0])
    s_dn = branch(dn_ref[...], w1_ref[H:, :], lnp_ref[H:, 0:1], lnp_ref[H:, 1:2],
                  lnp_ref[H:, 2:3], w2_ref[8:16, :], scal_ref[1])

    # Linear(2 -> 1) head, numerically stable softplus, clamp(max=3).
    o = s_up * scal_ref[2] + s_dn * scal_ref[3] + scal_ref[4]
    o = jnp.maximum(o, 0.0) + jnp.log1p(jnp.exp(-jnp.abs(o)))
    out_ref[...] = jnp.minimum(o, 3.0)


@jax.jit
def velocity_model_nam(upstream, downstream, params):
    """upstream, downstream: (N, M, T) float32.  Returns (M, N) float32."""
    N, M, T = upstream.shape
    H = params["w11"].shape[0]
    R = N * M

    TR = _choose_tile_rows(R, T, H)
    steps = _cdiv(R, TR)
    R_pad = steps * TR

    # Natural row-major layout: these reshapes are free (no HBM copies).
    up2d = upstream.reshape(R, T).astype(jnp.float32)
    dn2d = downstream.reshape(R, T).astype(jnp.float32)

    # Tiny, resident parameter slabs (torch (out, in) weight layout kept as-is).
    w1cat = jnp.concatenate([params["w11"], params["w21"]], axis=0)        # (2H, T)
    lnp = jnp.stack([jnp.concatenate([params["b11"], params["b21"]]),
                     jnp.concatenate([params["g11"], params["g21"]]),
                     jnp.concatenate([params["be11"], params["be21"]])],
                    axis=1)                                                # (2H, 3)
    w2pad = (jnp.zeros((16, H), jnp.float32)
             .at[0].set(params["w12"][0])
             .at[8].set(params["w22"][0]))                                 # (16, H)
    scal = jnp.concatenate([params["b12"], params["b22"],
                            params["w3"].reshape(-1), params["b3"]])       # (5,)

    const = lambda i: (0, 0)
    out2d = pl.pallas_call(
        velocity_nam_kernel,
        out_shape=jax.ShapeDtypeStruct((1, R_pad), jnp.float32),
        grid=(steps,),
        in_specs=[
            pl.BlockSpec((TR, T), lambda i: (i, 0)),              # upstream rows (streamed)
            pl.BlockSpec((TR, T), lambda i: (i, 0)),              # downstream rows (streamed)
            pl.BlockSpec((2 * H, T), const),                      # stacked branch weights
            pl.BlockSpec((2 * H, 3), const),                      # [b1 | gamma | beta]
            pl.BlockSpec((16, H), const),                         # padded H->1 weights
            pl.BlockSpec(memory_space=pltpu.MemorySpace.SMEM),    # scalar tail params
        ],
        out_specs=pl.BlockSpec((1, TR), lambda i: (0, i)),        # lane-dense output
        compiler_params=pltpu.CompilerParams(
            dimension_semantics=("parallel",),
            vmem_limit_bytes=32 * 1024 * 1024),
    )(up2d, dn2d, w1cat, lnp, w2pad, scal)

    # Drop row padding, then mirror out.squeeze(2).transpose(1, 0).
    return out2d[0, :R].reshape(N, M).transpose(1, 0)


def make_params(key, num_timesteps_input, hidden_units):
    """Parameters in torch layouts: Linear weight = (out_features, in_features)."""
    T, H = num_timesteps_input, hidden_units
    ks = jax.random.split(key, 12)
    s = 0.1
    return {
        "w11": jax.random.normal(ks[0], (H, T), jnp.float32) * s,
        "b11": jax.random.normal(ks[1], (H,), jnp.float32) * s,
        "g11": 1.0 + jax.random.normal(ks[2], (H,), jnp.float32) * s,
        "be11": jax.random.normal(ks[3], (H,), jnp.float32) * s,
        "w12": jax.random.normal(ks[4], (1, H), jnp.float32) * s,
        "b12": jax.random.normal(ks[5], (1,), jnp.float32) * s,
        "w21": jax.random.normal(ks[6], (H, T), jnp.float32) * s,
        "b21": jax.random.normal(ks[7], (H,), jnp.float32) * s,
        "g21": 1.0 + jax.random.normal(ks[8], (H,), jnp.float32) * s,
        "be21": jax.random.normal(ks[9], (H,), jnp.float32) * s,
        "w22": jax.random.normal(ks[10], (1, H), jnp.float32) * s,
        "b22": jax.random.normal(ks[11], (1,), jnp.float32) * s,
        "w3": jax.random.normal(ks[0], (1, 2), jnp.float32) * s,
        "b3": jax.random.normal(ks[1], (1,), jnp.float32) * s,
    }


def velocity_model_nam_ref(upstream, downstream, params):
    """Pure-JAX reference mirroring the PyTorch forward (eval mode)."""
    def branch(x, w1, b1, g, be, w2, b2):
        h = x @ w1.T + b1
        mu = jnp.mean(h, axis=-1, keepdims=True)
        var = jnp.mean(jnp.square(h - mu), axis=-1, keepdims=True)
        hn = (h - mu) / jnp.sqrt(var + LN_EPS) * g + be
        hn = jnp.maximum(hn, 0.0)
        return jax.nn.sigmoid(hn @ w2.T + b2)

    s_up = branch(upstream, params["w11"], params["b11"], params["g11"],
                  params["be11"], params["w12"], params["b12"])
    s_dn = branch(downstream, params["w21"], params["b21"], params["g21"],
                  params["be21"], params["w22"], params["b22"])
    x = jnp.concatenate([s_up, s_dn], axis=2)             # (N, M, 2)
    out = x @ params["w3"].T + params["b3"]               # (N, M, 1)
    out = jax.nn.softplus(out)
    out = out[..., 0].transpose(1, 0)                     # (M, N)
    return jnp.minimum(out, 3.0)


if __name__ == "__main__":
    key = jax.random.PRNGKey(0)
    k_up, k_dn, k_p = jax.random.split(key, 3)

    # batch N=4, segments M=32 (R = N*M = 128 rows), T=8 timesteps, H=32 hidden.
    N, M, T, H = 4, 32, 8, 32
    upstream = jax.random.normal(k_up, (N, M, T), jnp.float32)
    downstream = jax.random.normal(k_dn, (N, M, T), jnp.float32)
    params = make_params(k_p, T, H)

    out = jax.block_until_ready(velocity_model_nam(upstream, downstream, params))
    ref = velocity_model_nam_ref(upstream, downstream, params)

    assert out.shape == (M, N), out.shape
    assert jnp.allclose(out, ref, rtol=1e-4, atol=1e-5), float(jnp.max(jnp.abs(out - ref)))

    print("KERNEL_OK")
</pallas_src>

<mosaic_0001>
module attributes {stable_mosaic.version = 11 : i64} {
  func.func @velocity_nam_kernel(%arg0: i32, %arg1: memref<128x8xf32, #tpu.memory_space<vmem>>, %arg2: memref<128x8xf32, #tpu.memory_space<vmem>>, %arg3: memref<64x8xf32, #tpu.memory_space<vmem>>, %arg4: memref<64x3xf32, #tpu.memory_space<vmem>>, %arg5: memref<16x32xf32, #tpu.memory_space<vmem>>, %arg6: memref<5xf32, #tpu.memory_space<smem>>, %arg7: memref<1x128xf32, #tpu.memory_space<vmem>>) attributes {dimension_semantics = [#tpu.dimension_semantics<parallel>], iteration_bounds = array<i64: 1>, scalar_prefetch = 0 : i64, scratch_operands = 0 : i64, tpu.core_type = #tpu.core_type<tc>, window_params = [{transform_indices = @transform_0, window_bounds = array<i64: 128, 8>}, {transform_indices = @transform_1, window_bounds = array<i64: 128, 8>}, {pipeline_mode = #tpu.pipeline_mode<synchronous>, transform_indices = @transform_2, window_bounds = array<i64: 64, 8>}, {pipeline_mode = #tpu.pipeline_mode<synchronous>, transform_indices = @transform_3, window_bounds = array<i64: 64, 3>}, {pipeline_mode = #tpu.pipeline_mode<synchronous>, transform_indices = @transform_4, window_bounds = array<i64: 16, 32>}, {transform_indices = @transform_5, window_bounds = array<i64: 5>}, {transform_indices = @transform_6, window_bounds = array<i64: 1, 128>}]} {
    %c0 = arith.constant 0 : index
    %c0_0 = arith.constant 0 : index
    %0 = vector.load %arg1[%c0, %c0_0] : memref<128x8xf32, #tpu.memory_space<vmem>>, vector<128x8xf32>
    %c0_1 = arith.constant 0 : index
    %c0_2 = arith.constant 0 : index
    %1 = vector.load %arg3[%c0_1, %c0_2] : memref<64x8xf32, #tpu.memory_space<vmem>>, vector<32x8xf32>
    %c0_3 = arith.constant 0 : index
    %c0_4 = arith.constant 0 : index
    %2 = vector.load %arg4[%c0_3, %c0_4] : memref<64x3xf32, #tpu.memory_space<vmem>>, vector<32x1xf32>
    %c0_5 = arith.constant 0 : index
    %c1 = arith.constant 1 : index
    %3 = vector.load %arg4[%c0_5, %c1] : memref<64x3xf32, #tpu.memory_space<vmem>>, vector<32x1xf32>
    %c0_6 = arith.constant 0 : index
    %c2 = arith.constant 2 : index
    %4 = vector.load %arg4[%c0_6, %c2] : memref<64x3xf32, #tpu.memory_space<vmem>>, vector<32x1xf32>
    %c0_7 = arith.constant 0 : index
    %c0_8 = arith.constant 0 : index
    %5 = vector.load %arg5[%c0_7, %c0_8] : memref<16x32xf32, #tpu.memory_space<vmem>>, vector<8x32xf32>
    %c0_9 = arith.constant 0 : index
    %6 = memref.load %arg6[%c0_9] : memref<5xf32, #tpu.memory_space<smem>>
    %cst = arith.constant dense<0.000000e+00> : vector<32x128xf32>
    %7 = tpu.matmul %1, %0, %cst {dimension_numbers = #tpu.dot_dimension_numbers<[1], [1], [0], [0], [0, 0, 1, 0], [], []>} : vector<32x8xf32>, vector<128x8xf32>, vector<32x128xf32> -> vector<32x128xf32>
    %8 = vector.broadcast %2 : vector<32x1xf32> to vector<32x128xf32>
    %9 = arith.addf %7, %8 : vector<32x128xf32>
    %cst_10 = arith.constant dense<0.000000e+00> : vector<128xf32>
    %10 = vector.multi_reduction <add>, %9, %cst_10 [0] : vector<32x128xf32> to vector<128xf32>
    %11 = vector.shape_cast %10 : vector<128xf32> to vector<1x128xf32>
    %cst_11 = arith.constant 3.200000e+01 : f32
    %12 = vector.broadcast %cst_11 : f32 to vector<1x128xf32>
    %13 = arith.divf %11, %12 : vector<1x128xf32>
    %14 = arith.mulf %9, %9 : vector<32x128xf32>
    %cst_12 = arith.constant dense<0.000000e+00> : vector<128xf32>
    %15 = vector.multi_reduction <add>, %14, %cst_12 [0] : vector<32x128xf32> to vector<128xf32>
    %16 = vector.shape_cast %15 : vector<128xf32> to vector<1x128xf32>
    %cst_13 = arith.constant 3.200000e+01 : f32
    %17 = vector.broadcast %cst_13 : f32 to vector<1x128xf32>
    %18 = arith.divf %16, %17 : vector<1x128xf32>
    %19 = arith.mulf %13, %13 : vector<1x128xf32>
    %20 = arith.subf %18, %19 : vector<1x128xf32>
    %cst_14 = arith.constant 0.000000e+00 : f32
    %21 = vector.broadcast %cst_14 : f32 to vector<1x128xf32>
    %22 = arith.maximumf %20, %21 : vector<1x128xf32>
    %23 = vector.broadcast %13 : vector<1x128xf32> to vector<32x128xf32>
    %24 = arith.subf %9, %23 : vector<32x128xf32>
    %cst_15 = arith.constant 9.99999974E-6 : f32
    %25 = vector.broadcast %cst_15 : f32 to vector<1x128xf32>
    %26 = arith.addf %22, %25 : vector<1x128xf32>
    %27 = math.rsqrt %26 : vector<1x128xf32>
    %28 = vector.broadcast %27 : vector<1x128xf32> to vector<32x128xf32>
    %29 = arith.mulf %24, %28 : vector<32x128xf32>
    %30 = vector.broadcast %3 : vector<32x1xf32> to vector<32x128xf32>
    %31 = arith.mulf %29, %30 : vector<32x128xf32>
    %32 = vector.broadcast %4 : vector<32x1xf32> to vector<32x128xf32>
    %33 = arith.addf %31, %32 : vector<32x128xf32>
    %cst_16 = arith.constant 0.000000e+00 : f32
    %34 = vector.broadcast %cst_16 : f32 to vector<32x128xf32>
    %35 = arith.maximumf %33, %34 : vector<32x128xf32>
    %cst_17 = arith.constant dense<0.000000e+00> : vector<8x128xf32>
    %36 = tpu.matmul %5, %35, %cst_17 {dimension_numbers = #tpu.dot_dimension_numbers<[1], [0], [0], [1], [0, 0, 1, 1], [], []>} : vector<8x32xf32>, vector<32x128xf32>, vector<8x128xf32> -> vector<8x128xf32>
    %37 = vector.extract_strided_slice %36 {offsets = [0, 0], sizes = [1, 128], strides = [1, 1]} : vector<8x128xf32> to vector<1x128xf32>
    %38 = vector.broadcast %6 : f32 to vector<1x128xf32>
    %39 = arith.addf %37, %38 : vector<1x128xf32>
    %40 = arith.negf %39 : vector<1x128xf32>
    %41 = math.exp %40 : vector<1x128xf32>
    %cst_18 = arith.constant 1.000000e+00 : f32
    %42 = vector.broadcast %cst_18 : f32 to vector<1x128xf32>
    %43 = arith.addf %42, %41 : vector<1x128xf32>
    %44 = arith.divf %42, %43 : vector<1x128xf32>
    %c0_19 = arith.constant 0 : index
    %c0_20 = arith.constant 0 : index
    %45 = vector.load %arg2[%c0_19, %c0_20] : memref<128x8xf32, #tpu.memory_space<vmem>>, vector<128x8xf32>
    %c32 = arith.constant 32 : index
    %c0_21 = arith.constant 0 : index
    %46 = vector.load %arg3[%c32, %c0_21] : memref<64x8xf32, #tpu.memory_space<vmem>>, vector<32x8xf32>
    %c32_22 = arith.constant 32 : index
    %c0_23 = arith.constant 0 : index
    %47 = vector.load %arg4[%c32_22, %c0_23] : memref<64x3xf32, #tpu.memory_space<vmem>>, vector<32x1xf32>
    %c32_24 = arith.constant 32 : index
    %c1_25 = arith.constant 1 : index
    %48 = vector.load %arg4[%c32_24, %c1_25] : memref<64x3xf32, #tpu.memory_space<vmem>>, vector<32x1xf32>
    %c32_26 = arith.constant 32 : index
    %c2_27 = arith.constant 2 : index
    %49 = vector.load %arg4[%c32_26, %c2_27] : memref<64x3xf32, #tpu.memory_space<vmem>>, vector<32x1xf32>
    %c8 = arith.constant 8 : index
    %c0_28 = arith.constant 0 : index
    %50 = vector.load %arg5[%c8, %c0_28] : memref<16x32xf32, #tpu.memory_space<vmem>>, vector<8x32xf32>
    %c1_29 = arith.constant 1 : index
    %51 = memref.load %arg6[%c1_29] : memref<5xf32, #tpu.memory_space<smem>>
    %cst_30 = arith.constant dense<0.000000e+00> : vector<32x128xf32>
    %52 = tpu.matmul %46, %45, %cst_30 {dimension_numbers = #tpu.dot_dimension_numbers<[1], [1], [0], [0], [0, 0, 1, 0], [], []>} : vector<32x8xf32>, vector<128x8xf32>, vector<32x128xf32> -> vector<32x128xf32>
    %53 = vector.broadcast %47 : vector<32x1xf32> to vector<32x128xf32>
    %54 = arith.addf %52, %53 : vector<32x128xf32>
    %cst_31 = arith.constant dense<0.000000e+00> : vector<128xf32>
    %55 = vector.multi_reduction <add>, %54, %cst_31 [0] : vector<32x128xf32> to vector<128xf32>
    %56 = vector.shape_cast %55 : vector<128xf32> to vector<1x128xf32>
    %cst_32 = arith.constant 3.200000e+01 : f32
    %57 = vector.broadcast %cst_32 : f32 to vector<1x128xf32>
    %58 = arith.divf %56, %57 : vector<1x128xf32>
    %59 = arith.mulf %54, %54 : vector<32x128xf32>
    %cst_33 = arith.constant dense<0.000000e+00> : vector<128xf32>
    %60 = vector.multi_reduction <add>, %59, %cst_33 [0] : vector<32x128xf32> to vector<128xf32>
    %61 = vector.shape_cast %60 : vector<128xf32> to vector<1x128xf32>
    %cst_34 = arith.constant 3.200000e+01 : f32
    %62 = vector.broadcast %cst_34 : f32 to vector<1x128xf32>
    %63 = arith.divf %61, %62 : vector<1x128xf32>
    %64 = arith.mulf %58, %58 : vector<1x128xf32>
    %65 = arith.subf %63, %64 : vector<1x128xf32>
    %cst_35 = arith.constant 0.000000e+00 : f32
    %66 = vector.broadcast %cst_35 : f32 to vector<1x128xf32>
    %67 = arith.maximumf %65, %66 : vector<1x128xf32>
    %68 = vector.broadcast %58 : vector<1x128xf32> to vector<32x128xf32>
    %69 = arith.subf %54, %68 : vector<32x128xf32>
    %cst_36 = arith.constant 9.99999974E-6 : f32
    %70 = vector.broadcast %cst_36 : f32 to vector<1x128xf32>
    %71 = arith.addf %67, %70 : vector<1x128xf32>
    %72 = math.rsqrt %71 : vector<1x128xf32>
    %73 = vector.broadcast %72 : vector<1x128xf32> to vector<32x128xf32>
    %74 = arith.mulf %69, %73 : vector<32x128xf32>
    %75 = vector.broadcast %48 : vector<32x1xf32> to vector<32x128xf32>
    %76 = arith.mulf %74, %75 : vector<32x128xf32>
    %77 = vector.broadcast %49 : vector<32x1xf32> to vector<32x128xf32>
    %78 = arith.addf %76, %77 : vector<32x128xf32>
    %cst_37 = arith.constant 0.000000e+00 : f32
    %79 = vector.broadcast %cst_37 : f32 to vector<32x128xf32>
    %80 = arith.maximumf %78, %79 : vector<32x128xf32>
    %cst_38 = arith.constant dense<0.000000e+00> : vector<8x128xf32>
    %81 = tpu.matmul %50, %80, %cst_38 {dimension_numbers = #tpu.dot_dimension_numbers<[1], [0], [0], [1], [0, 0, 1, 1], [], []>} : vector<8x32xf32>, vector<32x128xf32>, vector<8x128xf32> -> vector<8x128xf32>
    %82 = vector.extract_strided_slice %81 {offsets = [0, 0], sizes = [1, 128], strides = [1, 1]} : vector<8x128xf32> to vector<1x128xf32>
    %83 = vector.broadcast %51 : f32 to vector<1x128xf32>
    %84 = arith.addf %82, %83 : vector<1x128xf32>
    %85 = arith.negf %84 : vector<1x128xf32>
    %86 = math.exp %85 : vector<1x128xf32>
    %cst_39 = arith.constant 1.000000e+00 : f32
    %87 = vector.broadcast %cst_39 : f32 to vector<1x128xf32>
    %88 = arith.addf %87, %86 : vector<1x128xf32>
    %89 = arith.divf %87, %88 : vector<1x128xf32>
    %c2_40 = arith.constant 2 : index
    %90 = memref.load %arg6[%c2_40] : memref<5xf32, #tpu.memory_space<smem>>
    %91 = vector.broadcast %90 : f32 to vector<1x128xf32>
    %92 = arith.mulf %44, %91 : vector<1x128xf32>
    %c3 = arith.constant 3 : index
    %93 = memref.load %arg6[%c3] : memref<5xf32, #tpu.memory_space<smem>>
    %94 = vector.broadcast %93 : f32 to vector<1x128xf32>
    %95 = arith.mulf %89, %94 : vector<1x128xf32>
    %96 = arith.addf %92, %95 : vector<1x128xf32>
    %c4 = arith.constant 4 : index
    %97 = memref.load %arg6[%c4] : memref<5xf32, #tpu.memory_space<smem>>
    %98 = vector.broadcast %97 : f32 to vector<1x128xf32>
    %99 = arith.addf %96, %98 : vector<1x128xf32>
    %cst_41 = arith.constant 0.000000e+00 : f32
    %100 = vector.broadcast %cst_41 : f32 to vector<1x128xf32>
    %101 = arith.maximumf %99, %100 : vector<1x128xf32>
    %102 = math.absf %99 : vector<1x128xf32>
    %cst_42 = arith.constant 0.000000e+00 : f32
    %103 = vector.broadcast %cst_42 : f32 to vector<1x128xf32>
    %104 = arith.subf %103, %102 : vector<1x128xf32>
    %105 = math.exp %104 : vector<1x128xf32>
    %106 = math.log1p %105 : vector<1x128xf32>
    %107 = arith.addf %101, %106 : vector<1x128xf32>
    %cst_43 = arith.constant 3.000000e+00 : f32
    %108 = vector.broadcast %cst_43 : f32 to vector<1x128xf32>
    %109 = arith.minimumf %107, %108 : vector<1x128xf32>
    %c0_44 = arith.constant 0 : index
    %c0_45 = arith.constant 0 : index
    %110 = vector.load %arg7[%c0_44, %c0_45] : memref<1x128xf32, #tpu.memory_space<vmem>>, vector<1x128xf32>
    tpu.vector_store %arg7[%c0_44, %c0_45], %109 {strides = array<i32>} : memref<1x128xf32, #tpu.memory_space<vmem>>, vector<1x128xf32>,
    return
  }
  func.func @transform_0(%arg0: i32) -> (i32, i32) {
    %c0_i32 = arith.constant 0 : i32
    %c0_i32_0 = arith.constant 0 : i32
    return %arg0, %c0_i32 : i32, i32
  }
  func.func @transform_1(%arg0: i32) -> (i32, i32) {
    %c0_i32 = arith.constant 0 : i32
    %c0_i32_0 = arith.constant 0 : i32
    return %arg0, %c0_i32 : i32, i32
  }
  func.func @transform_2(%arg0: i32) -> (i32, i32) {
    %c0_i32 = arith.constant 0 : i32
    %c0_i32_0 = arith.constant 0 : i32
    %c0_i32_1 = arith.constant 0 : i32
    return %c0_i32, %c0_i32_0 : i32, i32
  }
  func.func @transform_3(%arg0: i32) -> (i32, i32) {
    %c0_i32 = arith.constant 0 : i32
    %c0_i32_0 = arith.constant 0 : i32
    %c0_i32_1 = arith.constant 0 : i32
    return %c0_i32, %c0_i32_0 : i32, i32
  }
  func.func @transform_4(%arg0: i32) -> (i32, i32) {
    %c0_i32 = arith.constant 0 : i32
    %c0_i32_0 = arith.constant 0 : i32
    %c0_i32_1 = arith.constant 0 : i32
    return %c0_i32, %c0_i32_0 : i32, i32
  }
  func.func @transform_5(%arg0: i32) -> i32 {
    %c0_i32 = arith.constant 0 : i32
    %c0_i32_0 = arith.constant 0 : i32
    return %c0_i32 : i32
  }
  func.func @transform_6(%arg0: i32) -> (i32, i32) {
    %c0_i32 = arith.constant 0 : i32
    %c0_i32_0 = arith.constant 0 : i32
    return %c0_i32, %arg0 : i32, i32
  }
}

</mosaic_0001>

<llo_original>
// kernel: squeeze.5
$region0: #{squeeze.5}
  %s0 = inlined_call_operand.vmem [shape: f32[128], index: 0, kind: input, shape index: {}]
  %s1 = inlined_call_operand.hbm [shape: f32[4,32], index: 1, kind: output, shape index: {}]
  $region1: #{squeeze.5} parent=0
    #allocation0 [shape = 'u8[2048]{0}', space=vmem, size = 0x800, scoped, tag = 'operand span for operand 1']
    #allocation1 [shape = 's32[1]{0}', space=sflag, size = 0x4, scoped, tag = 'scoped memory for squeeze.5']
    #allocation2 [shape = 'u8[4096]{0}', space=vmem, size = 0x1000, scoped, tag = 'scoped mem for output reshape']
    #allocation3 [shape = 'u8[4096]{0}', space=vmem, size = 0x1000, scoped, tag = 'scoped mem for input reshape']
    %2 = vsyncpa [#allocation1], 0
    %s4 = sshllo.u32 0, 1
    %v5 = vld [vmem:[%s0] sm:%s4]
    %6 = vst [vmem:[#allocation3] sm:%s4] %v5
    %v7 = vld [vmem:[#allocation3] sm:$0x1]
    %vm8 = vcmask 261120
    %9 = vst.msk [vmem:[#allocation2] sm:$0x1] %vm8, %v7
    %v10 = vld [vmem:[#allocation3] sm:$0x1]
    %11 = vrot.lane.b32.xlu0 %v10, 96
    %v12 = vpop.permute.xlu0 %11
    %vm13 = vcmask 261120
    %s14 = scalar_lea.vmem [#allocation2], 1
    %15 = vst.msk [vmem:[%s14] sm:$0x1] %vm13, %v12
    %v16 = vld [vmem:[#allocation3] sm:$0x1]
    %17 = vrot.lane.b32.xlu0 %v16, 64
    %v18 = vpop.permute.xlu0 %17
    %vm19 = vcmask 261120
    %s20 = scalar_lea.vmem [#allocation2], 2
    %21 = vst.msk [vmem:[%s20] sm:$0x1] %vm19, %v18
    %v22 = vld [vmem:[#allocation3] sm:$0x1]
    %23 = vrot.lane.b32.xlu0 %v22, 32
    %v24 = vpop.permute.xlu0 %23
    %vm25 = vcmask 261120
    %s26 = scalar_lea.vmem [#allocation2], 3
    %27 = vst.msk [vmem:[%s26] sm:$0x1] %vm25, %v24
    %s29 = sshllo.u32 0, 4
    %v31 = vld [vmem:[#allocation2] sm:%s29]
    %s32 = sshllo.u32 0, 4
    %33 = vst [vmem:[#allocation0] sm:%s32] %v31
    %s35 = ssub.s32 64, 64
    %36 = vsyncadd [#allocation1], %s35
    %s38 = sshll.u32 [#allocation0], 4
    %s39 = int_to_ptr.vmem [resolvable:$true] %s38
    %41 = dma.vmem_to_hbm [thread:$0]  %s39, 64, %s1, [#allocation1]
    %42 = dma.done [#allocation1], 64
    %43 = vsyncpa [#allocation1], 1

// kernel: velocity_model_nam.1
$region0: #{velocity_model_nam.1}
  #allocation0 [shape = 'u32[]', space=smem, size = 0x4, offset = 0x4, fixed_abs, tag = 'smem constant byte address 0x4 - core index']
  #allocation1 [shape = 'u32[144,128]{1,0:T(1,128)}', space=vmem, size = 0x12000, scoped, tag = 'internal scratch']
  %s0 = inlined_call_operand.vmem [shape: f32[128,8], index: 0, kind: input, shape index: {}]
  %s1 = inlined_call_operand.vmem [shape: f32[128,8], index: 1, kind: input, shape index: {}]
  %s2 = inlined_call_operand.vmem [shape: f32[64,8], index: 2, kind: input, shape index: {}]
  %s3 = inlined_call_operand.vmem [shape: f32[64,3], index: 3, kind: input, shape index: {}]
  %s4 = inlined_call_operand.vmem [shape: f32[16,32], index: 4, kind: input, shape index: {}]
  %s5 = inlined_call_operand.vmem [shape: f32[5], index: 5, kind: input, shape index: {}]
  %s6 = inlined_call_operand.vmem [shape: f32[1,128], index: 6, kind: output, shape index: {}]
  %s7 = sld [smem:[#allocation0]]
  $region38: #{velocity_model_nam.1} parent=0
    _
  %s9 = ssub.s32 1, %s7
  %s10 = scalar_select 0, %s9, %s7
  $region1: #{velocity_model_nam.1} parent=0
    #allocation2 [shape = 'u8[512]{0}', space=smem, size = 0x200, scoped, tag = 'input window, operand 5, single buffered']
    #allocation3 [shape = 's32[1]{0}', space=sflag, size = 0x4, scoped, tag = 'scoped memory for velocity_model_nam.1']
    %11 = vsyncpa [#allocation3], 0
    // Predicated region
    $region2: #{velocity_model_nam.1} parent=1 // pred_check
      _
    $region3: #{velocity_model_nam.1} parent=1 // pred_check_branch
      %13 = sbr.rel (0) target = $region5
    $region4: #{velocity_model_nam.1} parent=1 // pred_region
      _
    $region5: #{velocity_model_nam.1} parent=1 // pred_fallthru
      _
    // Predicated region
    $region6: #{velocity_model_nam.1} parent=1 // pred_check
      _
    $region7: #{velocity_model_nam.1} parent=1 // pred_check_branch
      %15 = sbr.rel (0) target = $region9
    $region8: #{velocity_model_nam.1} parent=1 // pred_region
      _
    $region9: #{velocity_model_nam.1} parent=1 // pred_fallthru
      _
    // Predicated region
    $region10: #{velocity_model_nam.1} parent=1 // pred_check
      _
    $region11: #{velocity_model_nam.1} parent=1 // pred_check_branch
      %17 = sbr.rel (0) target = $region13
    $region12: #{velocity_model_nam.1} parent=1 // pred_region
      _
    $region13: #{velocity_model_nam.1} parent=1 // pred_fallthru
      _
    // Predicated region
    $region14: #{velocity_model_nam.1} parent=1 // pred_check
      _
    $region15: #{velocity_model_nam.1} parent=1 // pred_check_branch
      %19 = sbr.rel (0) target = $region17
    $region16: #{velocity_model_nam.1} parent=1 // pred_region
      _
    $region17: #{velocity_model_nam.1} parent=1 // pred_fallthru
      _
    // Predicated region
    $region18: #{velocity_model_nam.1} parent=1 // pred_check
      _
    $region19: #{velocity_model_nam.1} parent=1 // pred_check_branch
      %21 = sbr.rel (0) target = $region21
    $region20: #{velocity_model_nam.1} parent=1 // pred_region
      _
    $region21: #{velocity_model_nam.1} parent=1 // pred_fallthru
      _
    // Predicated region
    $region22: #{velocity_model_nam.1} parent=1 // pred_check
      _
    $region23: #{velocity_model_nam.1} parent=1 // pred_check_branch
      %23 = sbr.rel (0) target = $region25
    $region24: #{velocity_model_nam.1} parent=1 // pred_region
      %s25 = ssub.s32 16, 16
      %26 = vsyncadd [#allocation3], %s25
      %s28 = sshll.u32 %s5, 4
      %s29 = int_to_ptr.vmem [resolvable:$true] %s28
      %31 = dma.vmem_to_smem %s29, 16, [#allocation2], [#allocation3]
    $region25: #{velocity_model_nam.1} parent=1 // pred_fallthru
      _
    // Predicated region
    $region26: #{velocity_model_nam.1} parent=1 // pred_check
      _
    $region27: #{velocity_model_nam.1} parent=1 // pred_check_branch
      %33 = sbr.rel (0) target = $region29
    $region28: #{velocity_model_nam.1} parent=1 // pred_region
      %34 = dma.done [#allocation3], 16
    $region29: #{velocity_model_nam.1} parent=1 // pred_fallthru
      _
    %35 = sfence
    %v36 = vld [vmem:[%s0] sm:$0xff]
    %v37 = vld [vmem:[%s0 + $0x8] sm:$0xff]
    %v38 = vld [vmem:[%s0 + $0x10] sm:$0xff]
    %v39 = vld [vmem:[%s0 + $0x18] sm:$0xff]
    %v40 = vld [vmem:[%s0 + $0x20] sm:$0xff]
    %v41 = vld [vmem:[%s0 + $0x28] sm:$0xff]
    %v42 = vld [vmem:[%s0 + $0x30] sm:$0xff]
    %v43 = vld [vmem:[%s0 + $0x38] sm:$0xff]
    %v44 = vld [vmem:[%s0 + $0x40] sm:$0xff]
    %v45 = vld [vmem:[%s0 + $0x48] sm:$0xff]
    %v46 = vld [vmem:[%s0 + $0x50] sm:$0xff]
    %v47 = vld [vmem:[%s0 + $0x58] sm:$0xff]
    %v48 = vld [vmem:[%s0 + $0x60] sm:$0xff]
    %v49 = vld [vmem:[%s0 + $0x68] sm:$0xff]
    %v50 = vld [vmem:[%s0 + $0x70] sm:$0xff]
    %v51 = vld [vmem:[%s0 + $0x78] sm:$0xff]
    %v52 = vld [vmem:[%s2] sm:$0xff]
    %v53 = vld [vmem:[%s2 + $0x8] sm:$0xff]
    %v54 = vld [vmem:[%s2 + $0x10] sm:$0xff]
    %v55 = vld [vmem:[%s2 + $0x18] sm:$0xff]
    %v56 = vld [vmem:[%s3] sm:$0xff]
    %v57 = vld [vmem:[%s3 + $0x8] sm:$0xff]
    %v58 = vld [vmem:[%s3 + $0x10] sm:$0xff]
    %v59 = vld [vmem:[%s3 + $0x18] sm:$0xff]
    %v60 = vld [vmem:[%s4] sm:$0xff]
    %s61 = sld [smem:[#allocation2]]
    %63 = vset.pattern.permute.xlu0 0
    %64 = vperm.xlu0 %63, %v56
    %v65 = vpop.permute.xlu0 %64
    %68 = vset.pattern.permute.xlu0 0
    %69 = vperm.xlu0 %68, %v57
    %v70 = vpop.permute.xlu0 %69
    %73 = vset.pattern.permute.xlu0 0
    %74 = vperm.xlu0 %73, %v58
    %v75 = vpop.permute.xlu0 %74
    %78 = vset.pattern.permute.xlu0 0
    %79 = vperm.xlu0 %78, %v59
    %v80 = vpop.permute.xlu0 %79
    %vm82 = vcmask 64512
    %v84 = vsel %vm82, %v52, 0
    %v87 = vsel %vm82, %v53, 0
    %v90 = vsel %vm82, %v54, 0
    %v93 = vsel %vm82, %v55, 0
    %v96 = vsel %vm82, %v36, 0
    %v99 = vsel %vm82, %v37, 0
    %v102 = vsel %vm82, %v38, 0
    %v105 = vsel %vm82, %v39, 0
    %v108 = vsel %vm82, %v40, 0
    %v111 = vsel %vm82, %v41, 0
    %v114 = vsel %vm82, %v42, 0
    %v117 = vsel %vm82, %v43, 0
    %v120 = vsel %vm82, %v44, 0
    %v123 = vsel %vm82, %v45, 0
    %v126 = vsel %vm82, %v46, 0
    %v129 = vsel %vm82, %v47, 0
    %v132 = vsel %vm82, %v48, 0
    %v135 = vsel %vm82, %v49, 0
    %v138 = vsel %vm82, %v50, 0
    %v141 = vsel %vm82, %v51, 0
    %143 = vmatprep.subr.mxu0 0.0
    %144 = vmatpush1.xpose.msra.mxu0 %v96
    %145 = vmatprep.subr.mxu0 0.0
    %146 = vmatpush1.xpose.msra.mxu0 %v99
    %147 = vmatprep.subr.mxu0 0.0
    %148 = vmatpush1.xpose.msra.mxu0 %v102
    %149 = vmatprep.subr.mxu0 0.0
    %150 = vmatpush1.xpose.msra.mxu0 %v105
    %151 = vmatprep.subr.mxu0 0.0
    %152 = vmatpush1.xpose.msra.mxu0 %v108
    %153 = vmatprep.subr.mxu0 0.0
    %154 = vmatpush1.xpose.msra.mxu0 %v111
    %155 = vmatprep.subr.mxu0 0.0
    %156 = vmatpush1.xpose.msra.mxu0 %v114
    %157 = vmatprep.subr.mxu0 0.0
    %158 = vmatpush1.xpose.msra.mxu0 %v117
    %159 = vmatprep.subr.mxu0 0.0
    %160 = vmatpush1.xpose.msra.mxu0 %v120
    %161 = vmatprep.subr.mxu0 0.0
    %162 = vmatpush1.xpose.msra.mxu0 %v123
    %163 = vmatprep.subr.mxu0 0.0
    %164 = vmatpush1.xpose.msra.mxu0 %v126
    %165 = vmatprep.subr.mxu0 0.0
    %166 = vmatpush1.xpose.msra.mxu0 %v129
    %167 = vmatprep.subr.mxu0 0.0
    %168 = vmatpush1.xpose.msra.mxu0 %v132
    %169 = vmatprep.subr.mxu0 0.0
    %170 = vmatpush1.xpose.msra.mxu0 %v135
    %171 = vmatprep.subr.mxu0 0.0
    %172 = vmatpush1.xpose.msra.mxu0 %v138
    %173 = vmatprep.subr.mxu0 0.0
    %174 = vmatpush1.xpose.msra.mxu0 %v141
    %175 = vmatprep.subr.mxu0 0.0
    %176 = vmatpush1.xpose.msra.mxu0 0.0
    %177 = vmatprep.subr.mxu0 0.0
    %178 = vmatpush1.xpose.msra.mxu0 0.0
    %179 = vmatprep.subr.mxu0 0.0
    %180 = vmatpush1.xpose.msra.mxu0 0.0
    %181 = vmatprep.subr.mxu0 0.0
    %182 = vmatpush1.xpose.msra.mxu0 0.0
    %183 = vmatprep.subr.mxu0 0.0
    %184 = vmatpush1.xpose.msra.mxu0 0.0
    %185 = vmatprep.subr.mxu0 0.0
    %186 = vmatpush1.xpose.msra.mxu0 0.0
    %187 = vmatprep.subr.mxu0 0.0
    %188 = vmatpush1.xpose.msra.mxu0 0.0
    %189 = vmatprep.subr.mxu0 0.0
    %190 = vmatpush1.xpose.msra.mxu0 0.0
    %191 = vmatprep.subr.mxu0 0.0
    %192 = vmatpush1.xpose.msra.mxu0 0.0
    %193 = vmatprep.subr.mxu0 0.0
    %194 = vmatpush1.xpose.msra.mxu0 0.0
    %195 = vmatprep.subr.mxu0 0.0
    %196 = vmatpush1.xpose.msra.mxu0 0.0
    %197 = vmatprep.subr.mxu0 0.0
    %198 = vmatpush1.xpose.msra.mxu0 0.0
    %199 = vmatprep.subr.mxu0 0.0
    %200 = vmatpush1.xpose.msra.mxu0 0.0
    %201 = vmatprep.subr.mxu0 0.0
    %202 = vmatpush1.xpose.msra.mxu0 0.0
    %203 = vmatprep.subr.mxu0 0.0
    %204 = vmatpush1.xpose.msra.mxu0 0.0
    %205 = vmatprep.subr.mxu0 0.0
    %206 = vmatpush1.xpose.msra.mxu0 0.0
    %207 = vmatprep.mubr.f32.mxu0 0.0
    %208 = vmatmul.mubr.f32.gmra.mrb[0].mxu0 %v84
    %v209 = vpop.f32.mrb[0].mxu0
    %v210 = vadd.f32 %v65, %v209
    %v211 = vpop.f32.mrb[0].mxu0
    %212 = vmatprep.mubr.f32.mxu0 0.0
    %213 = vmatmul.mubr.f32.gmra.mrb[0].mxu0 %v87
    %v214 = vpop.f32.mrb[0].mxu0
    %v215 = vadd.f32 %v70, %v214
    %v216 = vpop.f32.mrb[0].mxu0
    %217 = vmatprep.mubr.f32.mxu0 0.0
    %218 = vmatmul.mubr.f32.gmra.mrb[0].mxu0 %v90
    %v219 = vpop.f32.mrb[0].mxu0
    %v220 = vadd.f32 %v75, %v219
    %v221 = vpop.f32.mrb[0].mxu0
    %222 = vmatprep.mubr.f32.mxu0 0.0
    %223 = vmatmul.mubr.f32.gmra.mrb[0].mxu0 %v93
    %v224 = vpop.f32.mrb[0].mxu0
    %v225 = vadd.f32 %v80, %v224
    %v226 = vpop.f32.mrb[0].mxu0
    %227 = vdwg.mxu0
    %v228 = vadd.f32 %v210, %v215
    %v229 = vadd.f32 %v228, %v220
    %v230 = vadd.f32 %v229, %v225
    %v231 = vrot.slane %v230, 4
    %v232 = vadd.f32 %v230, %v231
    %v233 = vrot.slane %v232, 2
    %v234 = vadd.f32 %v232, %v233
    %v235 = vrot.slane %v234, 1
    %v236 = vadd.f32 %v234, %v235
    %v237 = vrcp.pop 32.0
    %v238 = vmul.f32 %v236, %v237
    %v239 = vmul.f32 %v210, %v210
    %v240 = vmul.f32 %v215, %v215
    %v241 = vmul.f32 %v220, %v220
    %v242 = vmul.f32 %v225, %v225
    %v243 = vadd.f32 %v239, %v240
    %v244 = vadd.f32 %v243, %v241
    %v245 = vadd.f32 %v244, %v242
    %v246 = vrot.slane %v245, 4
    %v247 = vadd.f32 %v245, %v246
    %v248 = vrot.slane %v247, 2
    %v249 = vadd.f32 %v247, %v248
    %v250 = vrot.slane %v249, 1
    %v251 = vadd.f32 %v249, %v250
    %v252 = vmul.f32 %v251, %v237
    %v253 = vmul.f32 %v238, %v238
    %v254 = vsub.f32 %v252, %v253
    %v255 = vmax.f32 %v254, 0.0
    %v256 = vsub.f32 %v210, %v238
    %v257 = vsub.f32 %v215, %v238
    %v258 = vsub.f32 %v220, %v238
    %v259 = vsub.f32 %v225, %v238
    %v260 = vadd.f32 %v255, 1e-05
    %v261 = vrsqrt.pop %v260
    %v262 = vmul.f32 %v256, %v261
    %v263 = vmul.f32 %v257, %v261
    %v264 = vmul.f32 %v258, %v261
    %v265 = vmul.f32 %v259, %v261
    %266 = vset.pattern.permute.xlu0 1
    %267 = vperm.xlu0 %266, %v56
    %v268 = vpop.permute.xlu0 %267
    %270 = vset.pattern.permute.xlu0 1
    %271 = vperm.xlu0 %270, %v57
    %v272 = vpop.permute.xlu0 %271
    %274 = vset.pattern.permute.xlu0 1
    %275 = vperm.xlu0 %274, %v58
    %v276 = vpop.permute.xlu0 %275
    %278 = vset.pattern.permute.xlu0 1
    %279 = vperm.xlu0 %278, %v59
    %v280 = vpop.permute.xlu0 %279
    %v282 = vmul.f32 %v262, %v268
    %v283 = vmul.f32 %v263, %v272
    %v284 = vmul.f32 %v264, %v276
    %v285 = vmul.f32 %v265, %v280
    %286 = vset.pattern.permute.xlu0 2
    %287 = vperm.xlu0 %286, %v56
    %v288 = vpop.permute.xlu0 %287
    %290 = vset.pattern.permute.xlu0 2
    %291 = vperm.xlu0 %290, %v57
    %v292 = vpop.permute.xlu0 %291
    %294 = vset.pattern.permute.xlu0 2
    %295 = vperm.xlu0 %294, %v58
    %v296 = vpop.permute.xlu0 %295
    %298 = vset.pattern.permute.xlu0 2
    %299 = vperm.xlu0 %298, %v59
    %v300 = vpop.permute.xlu0 %299
    %v302 = vadd.f32 %v282, %v288
    %v303 = vadd.f32 %v283, %v292
    %v304 = vadd.f32 %v284, %v296
    %v305 = vadd.f32 %v285, %v300
    %v306 = vmax.f32 %v302, 0.0
    %v307 = vmax.f32 %v303, 0.0
    %v308 = vmax.f32 %v304, 0.0
    %v309 = vmax.f32 %v305, 0.0
    %vm310 = vcmask 261120
    %v312 = vsel %vm310, %v60, 0
    %314 = vmatprep.subr.mxu0 0.0
    %315 = vmatpush1.msra.mxu0 %v306
    %316 = vmatprep.subr.mxu0 0.0
    %317 = vmatpush1.msra.mxu0 %v307
    %318 = vmatprep.subr.mxu0 0.0
    %319 = vmatpush1.msra.mxu0 %v308
    %320 = vmatprep.subr.mxu0 0.0
    %321 = vmatpush1.msra.mxu0 %v309
    %322 = vmatprep.subr.mxu0 0.0
    %323 = vmatpush1.msra.mxu0 0.0
    %324 = vmatprep.subr.mxu0 0.0
    %325 = vmatpush1.msra.mxu0 0.0
    %326 = vmatprep.subr.mxu0 0.0
    %327 = vmatpush1.msra.mxu0 0.0
    %328 = vmatprep.subr.mxu0 0.0
    %329 = vmatpush1.msra.mxu0 0.0
    %330 = vmatprep.subr.mxu0 0.0
    %331 = vmatpush1.msra.mxu0 0.0
    %332 = vmatprep.subr.mxu0 0.0
    %333 = vmatpush1.msra.mxu0 0.0
    %334 = vmatprep.subr.mxu0 0.0
    %335 = vmatpush1.msra.mxu0 0.0
    %336 = vmatprep.subr.mxu0 0.0
    %337 = vmatpush1.msra.mxu0 0.0
    %338 = vmatprep.subr.mxu0 0.0
    %339 = vmatpush1.msra.mxu0 0.0
    %340 = vmatprep.subr.mxu0 0.0
    %341 = vmatpush1.msra.mxu0 0.0
    %342 = vmatprep.subr.mxu0 0.0
    %343 = vmatpush1.msra.mxu0 0.0
    %344 = vmatprep.subr.mxu0 0.0
    %345 = vmatpush1.msra.mxu0 0.0
    %346 = vmatprep.subr.mxu0 0.0
    %347 = vmatpush1.msra.mxu0 0.0
    %348 = vmatprep.subr.mxu0 0.0
    %349 = vmatpush1.msra.mxu0 0.0
    %350 = vmatprep.subr.mxu0 0.0
    %351 = vmatpush1.msra.mxu0 0.0
    %352 = vmatprep.subr.mxu0 0.0
    %353 = vmatpush1.msra.mxu0 0.0
    %354 = vmatprep.subr.mxu0 0.0
    %355 = vmatpush1.msra.mxu0 0.0
    %356 = vmatprep.subr.mxu0 0.0
    %357 = vmatpush1.msra.mxu0 0.0
    %358 = vmatprep.subr.mxu0 0.0
    %359 = vmatpush1.msra.mxu0 0.0
    %360 = vmatprep.subr.mxu0 0.0
    %361 = vmatpush1.msra.mxu0 0.0
    %362 = vmatprep.subr.mxu0 0.0
    %363 = vmatpush1.msra.mxu0 0.0
    %364 = vmatprep.subr.mxu0 0.0
    %365 = vmatpush1.msra.mxu0 0.0
    %366 = vmatprep.subr.mxu0 0.0
    %367 = vmatpush1.msra.mxu0 0.0
    %368 = vmatprep.subr.mxu0 0.0
    %369 = vmatpush1.msra.mxu0 0.0
    %370 = vmatprep.subr.mxu0 0.0
    %371 = vmatpush1.msra.mxu0 0.0
    %372 = vmatprep.subr.mxu0 0.0
    %373 = vmatpush1.msra.mxu0 0.0
    %374 = vmatprep.subr.mxu0 0.0
    %375 = vmatpush1.msra.mxu0 0.0
    %376 = vmatprep.subr.mxu0 0.0
    %377 = vmatpush1.msra.mxu0 0.0
    %378 = vmatprep.mubr.f32.mxu0 0.0
    %379 = vmatmul.mubr.f32.gmra.mrb[0].mxu0 %v312
    %v380 = vpop.f32.mrb[0].mxu0
    %v381 = vadd.f32 0.0, %v380
    %v382 = vpop.f32.mrb[0].mxu0
    %383 = vdwg.mxu0
    %v384 = vstv %s61
    %v385 = vadd.f32 %v381, %v384
    %v386 = vxor.u32 %v385, 2147483648
    %v387 = vmul.f32 %v386, 1.442695
    %v388 = vpow.pop %v387
    %v389 = vadd.f32 %v388, 1.0
    %v390 = vrcp.pop %v389
    %v391 = vmul.f32 1.0, %v390
    %v392 = vld [vmem:[%s1] sm:$0xff]
    %v393 = vld [vmem:[%s1 + $0x8] sm:$0xff]
    %v394 = vld [vmem:[%s1 + $0x10] sm:$0xff]
    %v395 = vld [vmem:[%s1 + $0x18] sm:$0xff]
    %v396 = vld [vmem:[%s1 + $0x20] sm:$0xff]
    %v397 = vld [vmem:[%s1 + $0x28] sm:$0xff]
    %v398 = vld [vmem:[%s1 + $0x30] sm:$0xff]
    %v399 = vld [vmem:[%s1 + $0x38] sm:$0xff]
    %v400 = vld [vmem:[%s1 + $0x40] sm:$0xff]
    %v401 = vld [vmem:[%s1 + $0x48] sm:$0xff]
    %v402 = vld [vmem:[%s1 + $0x50] sm:$0xff]
    %v403 = vld [vmem:[%s1 + $0x58] sm:$0xff]
    %v404 = vld [vmem:[%s1 + $0x60] sm:$0xff]
    %v405 = vld [vmem:[%s1 + $0x68] sm:$0xff]
    %v406 = vld [vmem:[%s1 + $0x70] sm:$0xff]
    %v407 = vld [vmem:[%s1 + $0x78] sm:$0xff]
    %v408 = vld [vmem:[%s2 + $0x20] sm:$0xff]
    %v409 = vld [vmem:[%s2 + $0x28] sm:$0xff]
    %v410 = vld [vmem:[%s2 + $0x30] sm:$0xff]
    %v411 = vld [vmem:[%s2 + $0x38] sm:$0xff]
    %v412 = vld [vmem:[%s3 + $0x20] sm:$0xff]
    %v413 = vld [vmem:[%s3 + $0x28] sm:$0xff]
    %v414 = vld [vmem:[%s3 + $0x30] sm:$0xff]
    %v415 = vld [vmem:[%s3 + $0x38] sm:$0xff]
    %v416 = vld [vmem:[%s4 + $0x8] sm:$0xff]
    %s417 = sld [smem:[#allocation2 + $0x1]]
    %419 = vset.pattern.permute.xlu0 0
    %420 = vperm.xlu0 %419, %v412
    %v421 = vpop.permute.xlu0 %420
    %424 = vset.pattern.permute.xlu0 0
    %425 = vperm.xlu0 %424, %v413
    %v426 = vpop.permute.xlu0 %425
    %429 = vset.pattern.permute.xlu0 0
    %430 = vperm.xlu0 %429, %v414
    %v431 = vpop.permute.xlu0 %430
    %434 = vset.pattern.permute.xlu0 0
    %435 = vperm.xlu0 %434, %v415
    %v436 = vpop.permute.xlu0 %435
    %v439 = vsel %vm82, %v408, 0
    %v442 = vsel %vm82, %v409, 0
    %v445 = vsel %vm82, %v410, 0
    %v448 = vsel %vm82, %v411, 0
    %v451 = vsel %vm82, %v392, 0
    %v454 = vsel %vm82, %v393, 0
    %v457 = vsel %vm82, %v394, 0
    %v460 = vsel %vm82, %v395, 0
    %v463 = vsel %vm82, %v396, 0
    %v466 = vsel %vm82, %v397, 0
    %v469 = vsel %vm82, %v398, 0
    %v472 = vsel %vm82, %v399, 0
    %v475 = vsel %vm82, %v400, 0
    %v478 = vsel %vm82, %v401, 0
    %v481 = vsel %vm82, %v402, 0
    %v484 = vsel %vm82, %v403, 0
    %v487 = vsel %vm82, %v404, 0
    %v490 = vsel %vm82, %v405, 0
    %v493 = vsel %vm82, %v406, 0
    %v496 = vsel %vm82, %v407, 0
    %498 = vmatprep.subr.mxu0 0.0
    %499 = vmatpush1.xpose.msra.mxu0 %v451
    %500 = vmatprep.subr.mxu0 0.0
    %501 = vmatpush1.xpose.msra.mxu0 %v454
    %502 = vmatprep.subr.mxu0 0.0
    %503 = vmatpush1.xpose.msra.mxu0 %v457
    %504 = vmatprep.subr.mxu0 0.0
    %505 = vmatpush1.xpose.msra.mxu0 %v460
    %506 = vmatprep.subr.mxu0 0.0
    %507 = vmatpush1.xpose.msra.mxu0 %v463
    %508 = vmatprep.subr.mxu0 0.0
    %509 = vmatpush1.xpose.msra.mxu0 %v466
    %510 = vmatprep.subr.mxu0 0.0
    %511 = vmatpush1.xpose.msra.mxu0 %v469
    %512 = vmatprep.subr.mxu0 0.0
    %513 = vmatpush1.xpose.msra.mxu0 %v472
    %514 = vmatprep.subr.mxu0 0.0
    %515 = vmatpush1.xpose.msra.mxu0 %v475
    %516 = vmatprep.subr.mxu0 0.0
    %517 = vmatpush1.xpose.msra.mxu0 %v478
    %518 = vmatprep.subr.mxu0 0.0
    %519 = vmatpush1.xpose.msra.mxu0 %v481
    %520 = vmatprep.subr.mxu0 0.0
    %521 = vmatpush1.xpose.msra.mxu0 %v484
    %522 = vmatprep.subr.mxu0 0.0
    %523 = vmatpush1.xpose.msra.mxu0 %v487
    %524 = vmatprep.subr.mxu0 0.0
    %525 = vmatpush1.xpose.msra.mxu0 %v490
    %526 = vmatprep.subr.mxu0 0.0
    %527 = vmatpush1.xpose.msra.mxu0 %v493
    %528 = vmatprep.subr.mxu0 0.0
    %529 = vmatpush1.xpose.msra.mxu0 %v496
    %530 = vmatprep.subr.mxu0 0.0
    %531 = vmatpush1.xpose.msra.mxu0 0.0
    %532 = vmatprep.subr.mxu0 0.0
    %533 = vmatpush1.xpose.msra.mxu0 0.0
    %534 = vmatprep.subr.mxu0 0.0
    %535 = vmatpush1.xpose.msra.mxu0 0.0
    %536 = vmatprep.subr.mxu0 0.0
    %537 = vmatpush1.xpose.msra.mxu0 0.0
    %538 = vmatprep.subr.mxu0 0.0
    %539 = vmatpush1.xpose.msra.mxu0 0.0
    %540 = vmatprep.subr.mxu0 0.0
    %541 = vmatpush1.xpose.msra.mxu0 0.0
    %542 = vmatprep.subr.mxu0 0.0
    %543 = vmatpush1.xpose.msra.mxu0 0.0
    %544 = vmatprep.subr.mxu0 0.0
    %545 = vmatpush1.xpose.msra.mxu0 0.0
    %546 = vmatprep.subr.mxu0 0.0
    %547 = vmatpush1.xpose.msra.mxu0 0.0
    %548 = vmatprep.subr.mxu0 0.0
    %549 = vmatpush1.xpose.msra.mxu0 0.0
    %550 = vmatprep.subr.mxu0 0.0
    %551 = vmatpush1.xpose.msra.mxu0 0.0
    %552 = vmatprep.subr.mxu0 0.0
    %553 = vmatpush1.xpose.msra.mxu0 0.0
    %554 = vmatprep.subr.mxu0 0.0
    %555 = vmatpush1.xpose.msra.mxu0 0.0
    %556 = vmatprep.subr.mxu0 0.0
    %557 = vmatpush1.xpose.msra.mxu0 0.0
    %558 = vmatprep.subr.mxu0 0.0
    %559 = vmatpush1.xpose.msra.mxu0 0.0
    %560 = vmatprep.subr.mxu0 0.0
    %561 = vmatpush1.xpose.msra.mxu0 0.0
    %562 = vmatprep.mubr.f32.mxu0 0.0
    %563 = vmatmul.mubr.f32.gmra.mrb[0].mxu0 %v439
    %v564 = vpop.f32.mrb[0].mxu0
    %v565 = vadd.f32 %v421, %v564
    %v566 = vpop.f32.mrb[0].mxu0
    %567 = vmatprep.mubr.f32.mxu0 0.0
    %568 = vmatmul.mubr.f32.gmra.mrb[0].mxu0 %v442
    %v569 = vpop.f32.mrb[0].mxu0
    %v570 = vadd.f32 %v426, %v569
    %v571 = vpop.f32.mrb[0].mxu0
    %572 = vmatprep.mubr.f32.mxu0 0.0
    %573 = vmatmul.mubr.f32.gmra.mrb[0].mxu0 %v445
    %v574 = vpop.f32.mrb[0].mxu0
    %v575 = vadd.f32 %v431, %v574
    %v576 = vpop.f32.mrb[0].mxu0
    %577 = vmatprep.mubr.f32.mxu0 0.0
    %578 = vmatmul.mubr.f32.gmra.mrb[0].mxu0 %v448
    %v579 = vpop.f32.mrb[0].mxu0
    %v580 = vadd.f32 %v436, %v579
    %v581 = vpop.f32.mrb[0].mxu0
    %582 = vdwg.mxu0
    %v583 = vadd.f32 %v565, %v570
    %v584 = vadd.f32 %v583, %v575
    %v585 = vadd.f32 %v584, %v580
    %v586 = vrot.slane %v585, 4
    %v587 = vadd.f32 %v585, %v586
    %v588 = vrot.slane %v587, 2
    %v589 = vadd.f32 %v587, %v588
    %v590 = vrot.slane %v589, 1
    %v591 = vadd.f32 %v589, %v590
    %v592 = vmul.f32 %v591, %v237
    %v593 = vmul.f32 %v565, %v565
    %v594 = vmul.f32 %v570, %v570
    %v595 = vmul.f32 %v575, %v575
    %v596 = vmul.f32 %v580, %v580
    %v597 = vadd.f32 %v593, %v594
    %v598 = vadd.f32 %v597, %v595
    %v599 = vadd.f32 %v598, %v596
    %v600 = vrot.slane %v599, 4
    %v601 = vadd.f32 %v599, %v600
    %v602 = vrot.slane %v601, 2
    %v603 = vadd.f32 %v601, %v602
    %v604 = vrot.slane %v603, 1
    %v605 = vadd.f32 %v603, %v604
    %v606 = vmul.f32 %v605, %v237
    %v607 = vmul.f32 %v592, %v592
    %v608 = vsub.f32 %v606, %v607
    %v609 = vmax.f32 %v608, 0.0
    %v610 = vsub.f32 %v565, %v592
    %v611 = vsub.f32 %v570, %v592
    %v612 = vsub.f32 %v575, %v592
    %v613 = vsub.f32 %v580, %v592
    %v614 = vadd.f32 %v609, 1e-05
    %v615 = vrsqrt.pop %v614
    %v616 = vmul.f32 %v610, %v615
    %v617 = vmul.f32 %v611, %v615
    %v618 = vmul.f32 %v612, %v615
    %v619 = vmul.f32 %v613, %v615
    %620 = vset.pattern.permute.xlu0 1
    %621 = vperm.xlu0 %620, %v412
    %v622 = vpop.permute.xlu0 %621
    %624 = vset.pattern.permute.xlu0 1
    %625 = vperm.xlu0 %624, %v413
    %v626 = vpop.permute.xlu0 %625
    %628 = vset.pattern.permute.xlu0 1
    %629 = vperm.xlu0 %628, %v414
    %v630 = vpop.permute.xlu0 %629
    %632 = vset.pattern.permute.xlu0 1
    %633 = vperm.xlu0 %632, %v415
    %v634 = vpop.permute.xlu0 %633
    %v636 = vmul.f32 %v616, %v622
    %v637 = vmul.f32 %v617, %v626
    %v638 = vmul.f32 %v618, %v630
    %v639 = vmul.f32 %v619, %v634
    %640 = vset.pattern.permute.xlu0 2
    %641 = vperm.xlu0 %640, %v412
    %v642 = vpop.permute.xlu0 %641
    %644 = vset.pattern.permute.xlu0 2
    %645 = vperm.xlu0 %644, %v413
    %v646 = vpop.permute.xlu0 %645
    %648 = vset.pattern.permute.xlu0 2
    %649 = vperm.xlu0 %648, %v414
    %v650 = vpop.permute.xlu0 %649
    %652 = vset.pattern.permute.xlu0 2
    %653 = vperm.xlu0 %652, %v415
    %v654 = vpop.permute.xlu0 %653
    %v656 = vadd.f32 %v636, %v642
    %v657 = vadd.f32 %v637, %v646
    %v658 = vadd.f32 %v638, %v650
    %v659 = vadd.f32 %v639, %v654
    %v660 = vmax.f32 %v656, 0.0
    %v661 = vmax.f32 %v657, 0.0
    %v662 = vmax.f32 %v658, 0.0
    %v663 = vmax.f32 %v659, 0.0
    %v665 = vsel %vm310, %v416, 0
    %667 = vmatprep.subr.mxu0 0.0
    %668 = vmatpush1.msra.mxu0 %v660
    %669 = vmatprep.subr.mxu0 0.0
    %670 = vmatpush1.msra.mxu0 %v661
    %671 = vmatprep.subr.mxu0 0.0
    %672 = vmatpush1.msra.mxu0 %v662
    %673 = vmatprep.subr.mxu0 0.0
    %674 = vmatpush1.msra.mxu0 %v663
    %675 = vmatprep.subr.mxu0 0.0
    %676 = vmatpush1.msra.mxu0 0.0
    %677 = vmatprep.subr.mxu0 0.0
    %678 = vmatpush1.msra.mxu0 0.0
    %679 = vmatprep.subr.mxu0 0.0
    %680 = vmatpush1.msra.mxu0 0.0
    %681 = vmatprep.subr.mxu0 0.0
    %682 = vmatpush1.msra.mxu0 0.0
    %683 = vmatprep.subr.mxu0 0.0
    %684 = vmatpush1.msra.mxu0 0.0
    %685 = vmatprep.subr.mxu0 0.0
    %686 = vmatpush1.msra.mxu0 0.0
    %687 = vmatprep.subr.mxu0 0.0
    %688 = vmatpush1.msra.mxu0 0.0
    %689 = vmatprep.subr.mxu0 0.0
    %690 = vmatpush1.msra.mxu0 0.0
    %691 = vmatprep.subr.mxu0 0.0
    %692 = vmatpush1.msra.mxu0 0.0
    %693 = vmatprep.subr.mxu0 0.0
    %694 = vmatpush1.msra.mxu0 0.0
    %695 = vmatprep.subr.mxu0 0.0
    %696 = vmatpush1.msra.mxu0 0.0
    %697 = vmatprep.subr.mxu0 0.0
    %698 = vmatpush1.msra.mxu0 0.0
    %699 = vmatprep.subr.mxu0 0.0
    %700 = vmatpush1.msra.mxu0 0.0
    %701 = vmatprep.subr.mxu0 0.0
    %702 = vmatpush1.msra.mxu0 0.0
    %703 = vmatprep.subr.mxu0 0.0
    %704 = vmatpush1.msra.mxu0 0.0
    %705 = vmatprep.subr.mxu0 0.0
    %706 = vmatpush1.msra.mxu0 0.0
    %707 = vmatprep.subr.mxu0 0.0
    %708 = vmatpush1.msra.mxu0 0.0
    %709 = vmatprep.subr.mxu0 0.0
    %710 = vmatpush1.msra.mxu0 0.0
    %711 = vmatprep.subr.mxu0 0.0
    %712 = vmatpush1.msra.mxu0 0.0
    %713 = vmatprep.subr.mxu0 0.0
    %714 = vmatpush1.msra.mxu0 0.0
    %715 = vmatprep.subr.mxu0 0.0
    %716 = vmatpush1.msra.mxu0 0.0
    %717 = vmatprep.subr.mxu0 0.0
    %718 = vmatpush1.msra.mxu0 0.0
    %719 = vmatprep.subr.mxu0 0.0
    %720 = vmatpush1.msra.mxu0 0.0
    %721 = vmatprep.subr.mxu0 0.0
    %722 = vmatpush1.msra.mxu0 0.0
    %723 = vmatprep.subr.mxu0 0.0
    %724 = vmatpush1.msra.mxu0 0.0
    %725 = vmatprep.subr.mxu0 0.0
    %726 = vmatpush1.msra.mxu0 0.0
    %727 = vmatprep.subr.mxu0 0.0
    %728 = vmatpush1.msra.mxu0 0.0
    %729 = vmatprep.subr.mxu0 0.0
    %730 = vmatpush1.msra.mxu0 0.0
    %731 = vmatprep.mubr.f32.mxu0 0.0
    %732 = vmatmul.mubr.f32.gmra.mrb[0].mxu0 %v665
    %v733 = vpop.f32.mrb[0].mxu0
    %v734 = vadd.f32 0.0, %v733
    %v735 = vpop.f32.mrb[0].mxu0
    %736 = vdwg.mxu0
    %v737 = vstv %s417
    %v738 = vadd.f32 %v734, %v737
    %v739 = vxor.u32 %v738, 2147483648
    %v740 = vmul.f32 %v739, 1.442695
    %v741 = vpow.pop %v740
    %v742 = vadd.f32 %v741, 1.0
    %v743 = vrcp.pop %v742
    %v744 = vmul.f32 1.0, %v743
    %s745 = sld [smem:[#allocation2 + $0x2]]
    %v746 = vstv %s745
    %v747 = vmul.f32 %v391, %v746
    %s748 = sld [smem:[#allocation2 + $0x3]]
    %v749 = vstv %s748
    %v750 = vmul.f32 %v744, %v749
    %v751 = vadd.f32 %v747, %v750
    %s752 = sld [smem:[#allocation2 + $0x4]]
    %v753 = vstv %s752
    %v754 = vadd.f32 %v751, %v753
    %v755 = vmax.f32 %v754, 0.0
    %v756 = vand.u32 2147483647, %v754
    %v757 = vsub.f32 0.0, %v756
    %v758 = vmul.f32 %v757, 1.442695
    %v759 = vpow.pop %v758
    %v760 = vadd.f32 %v759, 1.0
    %v761 = vlog2.pop %v760
    %v762 = vmul.f32 %v761, 0.6931472
    %v763 = vmul.f32 -0.5, %v759
    %v764 = vadd.f32 %v763, 1.0
    %v765 = vmul.f32 %v764, %v759
    %v766 = vand.u32 2147483647, %v759
    %vm767 = vcmp.lt.f32.partialorder %v766, 0.0004427343
    %v768 = vsel %vm767, %v765, %v762
    %v769 = vadd.f32 %v755, %v768
    %v770 = vmin.f32 %v769, 3.0
    %771 = vst [vmem:[%s6] sm:$0x1] %v770
    // Predicated region
    $region30: #{velocity_model_nam.1} parent=1 // pred_check
      _
    $region31: #{velocity_model_nam.1} parent=1 // pred_check_branch
      %773 = sbr.rel (0) target = $region33
    $region32: #{velocity_model_nam.1} parent=1 // pred_region
      _
    $region33: #{velocity_model_nam.1} parent=1 // pred_fallthru
      _
    // Predicated region
    $region34: #{velocity_model_nam.1} parent=1 // pred_check
      _
    $region35: #{velocity_model_nam.1} parent=1 // pred_check_branch
      %775 = sbr.rel (0) target = $region37
    $region36: #{velocity_model_nam.1} parent=1 // pred_region
      _
    $region37: #{velocity_model_nam.1} parent=1 // pred_fallthru
      _
    %776 = vsyncpa [#allocation3], 1

</llo_original>
